<compile_context>
chip_gen: v7x
topology: tpu7x:2x2x1
jax: 0.10.0
libtpu: 0.0.40
codegen_flags: <defaults>
</compile_context>

<pallas_src>
import jax
import jax.numpy as jnp
from jax import lax
from jax.experimental import pallas as pl
from jax.experimental.pallas import tpu as pltpu


# ----------------------------- kernel ---------------------------------------

def _basic_block_kernel(x_ref, m1_ref, m2_ref, bias_ref, o_ref, pad_ref):
    # x_ref:   (N, H, WC)        lane-dense activation (W and C fused into lanes)
    # m1_ref:  (3*WC, WC)        K-stacked banded conv1 weights (bn1 scale folded)
    # m2_ref:  (3*WC, WC)        K-stacked banded conv2 weights (bn2 scale folded)
    # bias_ref:(2, WC)           folded BN biases (row 0: bn1, row 1: bn2)
    # o_ref:   (N, H, WC)        output
    # pad_ref: (N, H+2, WC) f32  row-padded staging buffer, reused for x then out1
    N, H, WC = x_ref.shape
    NH = N * H
    Hp = H + 2
    cdt = m1_ref.dtype  # matmul operand dtype (bf16 default, f32 optional)

    x = x_ref[...].astype(jnp.float32)            # (N, H, WC)

    # Zero the 2 halo rows once; they stay zero for both convs.
    pad_ref[:, 0:1, :] = jnp.zeros((N, 1, WC), jnp.float32)
    pad_ref[:, Hp - 1:Hp, :] = jnp.zeros((N, 1, WC), jnp.float32)

    def conv(m_ref):
        # K-concatenate the three row taps -> a single fat MXU matmul.
        lhs = jnp.concatenate(
            [pad_ref[:, ky:ky + H, :].reshape(NH, WC) for ky in range(3)],
            axis=1)                                # (NH, 3*WC), f32
        return jnp.dot(lhs.astype(cdt), m_ref[...],
                       preferred_element_type=jnp.float32)   # (NH, WC) f32

    # conv1 (+ bn1 scale folded into weights) -> bias -> relu
    pad_ref[:, 1:1 + H, :] = x
    out1 = jnp.maximum(conv(m1_ref) + bias_ref[0:1, :], 0.0)

    # conv2 (+ bn2 scale folded) -> bias
    pad_ref[:, 1:1 + H, :] = out1.reshape(N, H, WC)
    out2 = conv(m2_ref) + bias_ref[1:2, :]

    # residual add (downsample is None -> identity) + relu, lane-dense store
    out = jnp.maximum(out2 + x.reshape(NH, WC), 0.0)
    o_ref[...] = out.reshape(N, H, WC).astype(o_ref.dtype)


# ----------------------- one-time parameter prep ----------------------------

def _banded_conv_matrix(w_hwio, W):
    """(3,3,Cin,Cout) HWIO weights -> (3*W*Cin, W*Cout) K-stacked banded matrices.

    Block ky of the result satisfies
      M[ky][wp*Cin+ci, w*Cout+co] = w[ky, wp-w+1, ci, co] if |wp-w| <= 1 else 0,
    so a 3x3 / stride-1 / pad-1 conv over a row-padded (H+2, W*C) slab is
      out[h, :] = concat_ky(x_rowpad[h+ky, :]) @ M_stacked
    (column padding is handled by band truncation at the edges).
    """
    kh, kw, Ci, Co = w_hwio.shape
    mats = []
    for ky in range(kh):
        acc = jnp.zeros((W, Ci, W, Co), jnp.float32)
        for kx in range(kw):
            # sel[wp, w] = 1 iff wp == w + (kx - 1)
            sel = jnp.eye(W, k=1 - kx, dtype=jnp.float32)
            acc = acc + sel[:, None, :, None] * w_hwio[ky, kx][None, :, None, :]
        mats.append(acc.reshape(W * Ci, W * Co))
    return jnp.concatenate(mats, axis=0)          # (3*W*Ci, W*Co)


def prepare_basic_block(params, W, eps=1e-5, matmul_dtype=jnp.bfloat16):
    """Param-load-time preprocessing (call ONCE, not per forward).

    matmul_dtype=bfloat16 (default): full MXU rate on v5e/v6e/v7x, f32 accumulation.
    matmul_dtype=float32: matches the PyTorch reference to ~1e-5.
    """
    # PyTorch (Cout, Cin, kh, kw) -> HWIO (kh, kw, Cin, Cout)
    w1 = jnp.transpose(params["w1"], (2, 3, 1, 0)).astype(jnp.float32)
    w2 = jnp.transpose(params["w2"], (2, 3, 1, 0)).astype(jnp.float32)

    # Fold eval-mode BatchNorm scale into the conv weights; keep biases separate.
    s1 = params["g1"] / jnp.sqrt(params["v1"] + eps)
    b1 = params["b1"] - params["m1"] * s1
    s2 = params["g2"] / jnp.sqrt(params["v2"] + eps)
    b2 = params["b2"] - params["m2"] * s2

    m1 = _banded_conv_matrix(w1 * s1[None, None, None, :], W).astype(matmul_dtype)
    m2 = _banded_conv_matrix(w2 * s2[None, None, None, :], W).astype(matmul_dtype)
    bias = jnp.stack([jnp.tile(b1, W), jnp.tile(b2, W)]).astype(jnp.float32)
    return {"m1": m1, "m2": m2, "bias": bias}


# ------------------------------ per-call API ---------------------------------

def basic_block_apply(x_lane_dense, prep):
    """x_lane_dense: (N, H, W*C).  Chain this across blocks (no layout changes)."""
    N, H, WC = x_lane_dense.shape
    return pl.pallas_call(
        _basic_block_kernel,
        out_shape=jax.ShapeDtypeStruct((N, H, WC), x_lane_dense.dtype),
        grid_spec=pltpu.PrefetchScalarGridSpec(
            num_scalar_prefetch=0,
            grid=(1,),  # whole batch in one step (batch folded into matmul M)
            in_specs=[
                pl.BlockSpec((N, H, WC), lambda i: (0, 0, 0)),
                pl.BlockSpec((3 * WC, WC), lambda i: (0, 0)),
                pl.BlockSpec((3 * WC, WC), lambda i: (0, 0)),
                pl.BlockSpec((2, WC), lambda i: (0, 0)),
            ],
            out_specs=pl.BlockSpec((N, H, WC), lambda i: (0, 0, 0)),
            scratch_shapes=[pltpu.VMEM((N, H + 2, WC), jnp.float32)],
        ),
        compiler_params=pltpu.CompilerParams(
            dimension_semantics=("arbitrary",)),
    )(x_lane_dense, prep["m1"], prep["m2"], prep["bias"])


def basic_block_forward(x_nchw, prep):
    """NCHW convenience wrapper (interface parity with the PyTorch module)."""
    N, C, H, W = x_nchw.shape
    x_ld = jnp.transpose(x_nchw, (0, 2, 3, 1)).reshape(N, H, W * C)
    out_ld = basic_block_apply(x_ld, prep)
    return jnp.transpose(out_ld.reshape(N, H, W, C), (0, 3, 1, 2))


# ------------------------------ reference ------------------------------------

def _reference(x, params, eps=1e-5):
    """Pure-JAX reference matching PyTorch BasicBlock (eval-mode BN)."""
    def conv(x, w):
        return lax.conv_general_dilated(
            x, w, window_strides=(1, 1), padding=((1, 1), (1, 1)),
            dimension_numbers=("NCHW", "OIHW", "NCHW"))

    def bn(x, g, b, m, v):
        g, b, m, v = (a[None, :, None, None] for a in (g, b, m, v))
        return (x - m) / jnp.sqrt(v + eps) * g + b

    out = jax.nn.relu(bn(conv(x, params["w1"]),
                         params["g1"], params["b1"], params["m1"], params["v1"]))
    out = bn(conv(out, params["w2"]),
             params["g2"], params["b2"], params["m2"], params["v2"])
    return jax.nn.relu(out + x)


def _make_params(key, planes):
    ks = jax.random.split(key, 10)
    return {
        "w1": 0.1 * jax.random.normal(ks[0], (planes, planes, 3, 3), jnp.float32),
        "w2": 0.1 * jax.random.normal(ks[1], (planes, planes, 3, 3), jnp.float32),
        "g1": jax.random.uniform(ks[2], (planes,), jnp.float32, 0.5, 1.5),
        "b1": 0.1 * jax.random.normal(ks[3], (planes,), jnp.float32),
        "m1": 0.1 * jax.random.normal(ks[4], (planes,), jnp.float32),
        "v1": jax.random.uniform(ks[5], (planes,), jnp.float32, 0.5, 1.5),
        "g2": jax.random.uniform(ks[6], (planes,), jnp.float32, 0.5, 1.5),
        "b2": 0.1 * jax.random.normal(ks[7], (planes,), jnp.float32),
        "m2": 0.1 * jax.random.normal(ks[8], (planes,), jnp.float32),
        "v2": jax.random.uniform(ks[9], (planes,), jnp.float32, 0.5, 1.5),
    }


if __name__ == "__main__":
    key = jax.random.PRNGKey(0)
    k_x, k_p = jax.random.split(key)

    N, C, H, W = 2, 8, 16, 16          # inplanes = planes = 8, stride = 1, W*C = 128
    x = jax.random.normal(k_x, (N, C, H, W), jnp.float32)
    params = _make_params(k_p, C)

    ref = jax.block_until_ready(_reference(x, params))

    # --- default bf16-operand path (full MXU rate, f32 accumulation) ---
    prep_bf16 = prepare_basic_block(params, W, matmul_dtype=jnp.bfloat16)
    out_bf16 = jax.block_until_ready(basic_block_forward(x, prep_bf16))
    assert out_bf16.shape == (N, C, H, W)
    err_bf16 = float(jnp.max(jnp.abs(out_bf16 - ref)))
    assert jnp.allclose(out_bf16, ref, atol=7.5e-2, rtol=2e-2), err_bf16

    # --- f32-operand path: tight check against the PyTorch-equivalent reference ---
    prep_f32 = prepare_basic_block(params, W, matmul_dtype=jnp.float32)
    out_f32 = jax.block_until_ready(basic_block_forward(x, prep_f32))
    err_f32 = float(jnp.max(jnp.abs(out_f32 - ref)))
    assert jnp.allclose(out_f32, ref, atol=1e-4, rtol=1e-4), err_f32

    print("KERNEL_OK")
</pallas_src>

<mosaic_0001>
module attributes {stable_mosaic.version = 11 : i64} {
  func.func @_basic_block_kernel(%arg0: i32, %arg1: memref<2x16x128xf32, #tpu.memory_space<vmem>>, %arg2: memref<384x128xbf16, #tpu.memory_space<vmem>>, %arg3: memref<384x128xbf16, #tpu.memory_space<vmem>>, %arg4: memref<2x128xf32, #tpu.memory_space<vmem>>, %arg5: memref<2x16x128xf32, #tpu.memory_space<vmem>>, %arg6: memref<2x18x128xf32, #tpu.memory_space<vmem>>) attributes {dimension_semantics = [#tpu.dimension_semantics<arbitrary>], iteration_bounds = array<i64: 1>, scalar_prefetch = 0 : i64, scratch_operands = 1 : i64, tpu.core_type = #tpu.core_type<tc>, window_params = [{pipeline_mode = #tpu.pipeline_mode<synchronous>, transform_indices = @transform_0, window_bounds = array<i64: 2, 16, 128>}, {pipeline_mode = #tpu.pipeline_mode<synchronous>, transform_indices = @transform_1, window_bounds = array<i64: 384, 128>}, {pipeline_mode = #tpu.pipeline_mode<synchronous>, transform_indices = @transform_2, window_bounds = array<i64: 384, 128>}, {pipeline_mode = #tpu.pipeline_mode<synchronous>, transform_indices = @transform_3, window_bounds = array<i64: 2, 128>}, {pipeline_mode = #tpu.pipeline_mode<synchronous>, transform_indices = @transform_4, window_bounds = array<i64: 2, 16, 128>}]} {
    %c0 = arith.constant 0 : index
    %c0_0 = arith.constant 0 : index
    %c0_1 = arith.constant 0 : index
    %0 = vector.load %arg1[%c0, %c0_0, %c0_1] : memref<2x16x128xf32, #tpu.memory_space<vmem>>, vector<2x16x128xf32>
    %cst = arith.constant 0.000000e+00 : f32
    %1 = vector.broadcast %cst : f32 to vector<2x1x128xf32>
    %c0_2 = arith.constant 0 : index
    %c0_3 = arith.constant 0 : index
    %c0_4 = arith.constant 0 : index
    %2 = vector.load %arg6[%c0_2, %c0_3, %c0_4] : memref<2x18x128xf32, #tpu.memory_space<vmem>>, vector<2x1x128xf32>
    tpu.vector_store %arg6[%c0_2, %c0_3, %c0_4], %1 {strides = array<i32>} : memref<2x18x128xf32, #tpu.memory_space<vmem>>, vector<2x1x128xf32>,
    %cst_5 = arith.constant 0.000000e+00 : f32
    %3 = vector.broadcast %cst_5 : f32 to vector<2x1x128xf32>
    %c0_6 = arith.constant 0 : index
    %c17 = arith.constant 17 : index
    %c0_7 = arith.constant 0 : index
    %4 = vector.load %arg6[%c0_6, %c17, %c0_7] : memref<2x18x128xf32, #tpu.memory_space<vmem>>, vector<2x1x128xf32>
    tpu.vector_store %arg6[%c0_6, %c17, %c0_7], %3 {strides = array<i32>} : memref<2x18x128xf32, #tpu.memory_space<vmem>>, vector<2x1x128xf32>,
    %c0_8 = arith.constant 0 : index
    %c1 = arith.constant 1 : index
    %c0_9 = arith.constant 0 : index
    %5 = vector.load %arg6[%c0_8, %c1, %c0_9] : memref<2x18x128xf32, #tpu.memory_space<vmem>>, vector<2x16x128xf32>
    tpu.vector_store %arg6[%c0_8, %c1, %c0_9], %0 {strides = array<i32>} : memref<2x18x128xf32, #tpu.memory_space<vmem>>, vector<2x16x128xf32>,
    %c0_10 = arith.constant 0 : index
    %c0_11 = arith.constant 0 : index
    %c0_12 = arith.constant 0 : index
    %6 = vector.load %arg6[%c0_10, %c0_11, %c0_12] : memref<2x18x128xf32, #tpu.memory_space<vmem>>, vector<2x16x128xf32>
    %7 = vector.shape_cast %6 : vector<2x16x128xf32> to vector<32x128xf32>
    %c0_13 = arith.constant 0 : index
    %c1_14 = arith.constant 1 : index
    %c0_15 = arith.constant 0 : index
    %8 = vector.load %arg6[%c0_13, %c1_14, %c0_15] : memref<2x18x128xf32, #tpu.memory_space<vmem>>, vector<2x16x128xf32>
    %9 = vector.shape_cast %8 : vector<2x16x128xf32> to vector<32x128xf32>
    %c0_16 = arith.constant 0 : index
    %c2 = arith.constant 2 : index
    %c0_17 = arith.constant 0 : index
    %10 = vector.load %arg6[%c0_16, %c2, %c0_17] : memref<2x18x128xf32, #tpu.memory_space<vmem>>, vector<2x16x128xf32>
    %11 = vector.shape_cast %10 : vector<2x16x128xf32> to vector<32x128xf32>
    %12 = tpu.concatenate %7, %9, %11 in 1 : vector<32x128xf32>, vector<32x128xf32>, vector<32x128xf32> -> vector<32x384xf32>
    %13 = arith.truncf %12 : vector<32x384xf32> to vector<32x384xbf16>
    %c0_18 = arith.constant 0 : index
    %c0_19 = arith.constant 0 : index
    %14 = vector.load %arg2[%c0_18, %c0_19] : memref<384x128xbf16, #tpu.memory_space<vmem>>, vector<384x128xbf16>
    %cst_20 = arith.constant dense<0.000000e+00> : vector<32x128xf32>
    %15 = tpu.matmul %13, %14, %cst_20 {dimension_numbers = #tpu.dot_dimension_numbers<[1], [0], [0], [1], [0, 0, 1, 1], [], []>} : vector<32x384xbf16>, vector<384x128xbf16>, vector<32x128xf32> -> vector<32x128xf32>
    %c0_21 = arith.constant 0 : index
    %c0_22 = arith.constant 0 : index
    %16 = vector.load %arg4[%c0_21, %c0_22] : memref<2x128xf32, #tpu.memory_space<vmem>>, vector<1x128xf32>
    %17 = vector.broadcast %16 : vector<1x128xf32> to vector<32x128xf32>
    %18 = arith.addf %15, %17 : vector<32x128xf32>
    %cst_23 = arith.constant 0.000000e+00 : f32
    %19 = vector.broadcast %cst_23 : f32 to vector<32x128xf32>
    %20 = arith.maximumf %18, %19 : vector<32x128xf32>
    %21 = vector.shape_cast %20 : vector<32x128xf32> to vector<2x16x128xf32>
    %c0_24 = arith.constant 0 : index
    %c1_25 = arith.constant 1 : index
    %c0_26 = arith.constant 0 : index
    %22 = vector.load %arg6[%c0_24, %c1_25, %c0_26] : memref<2x18x128xf32, #tpu.memory_space<vmem>>, vector<2x16x128xf32>
    tpu.vector_store %arg6[%c0_24, %c1_25, %c0_26], %21 {strides = array<i32>} : memref<2x18x128xf32, #tpu.memory_space<vmem>>, vector<2x16x128xf32>,
    %c0_27 = arith.constant 0 : index
    %c0_28 = arith.constant 0 : index
    %c0_29 = arith.constant 0 : index
    %23 = vector.load %arg6[%c0_27, %c0_28, %c0_29] : memref<2x18x128xf32, #tpu.memory_space<vmem>>, vector<2x16x128xf32>
    %24 = vector.shape_cast %23 : vector<2x16x128xf32> to vector<32x128xf32>
    %c0_30 = arith.constant 0 : index
    %c1_31 = arith.constant 1 : index
    %c0_32 = arith.constant 0 : index
    %25 = vector.load %arg6[%c0_30, %c1_31, %c0_32] : memref<2x18x128xf32, #tpu.memory_space<vmem>>, vector<2x16x128xf32>
    %26 = vector.shape_cast %25 : vector<2x16x128xf32> to vector<32x128xf32>
    %c0_33 = arith.constant 0 : index
    %c2_34 = arith.constant 2 : index
    %c0_35 = arith.constant 0 : index
    %27 = vector.load %arg6[%c0_33, %c2_34, %c0_35] : memref<2x18x128xf32, #tpu.memory_space<vmem>>, vector<2x16x128xf32>
    %28 = vector.shape_cast %27 : vector<2x16x128xf32> to vector<32x128xf32>
    %29 = tpu.concatenate %24, %26, %28 in 1 : vector<32x128xf32>, vector<32x128xf32>, vector<32x128xf32> -> vector<32x384xf32>
    %30 = arith.truncf %29 : vector<32x384xf32> to vector<32x384xbf16>
    %c0_36 = arith.constant 0 : index
    %c0_37 = arith.constant 0 : index
    %31 = vector.load %arg3[%c0_36, %c0_37] : memref<384x128xbf16, #tpu.memory_space<vmem>>, vector<384x128xbf16>
    %cst_38 = arith.constant dense<0.000000e+00> : vector<32x128xf32>
    %32 = tpu.matmul %30, %31, %cst_38 {dimension_numbers = #tpu.dot_dimension_numbers<[1], [0], [0], [1], [0, 0, 1, 1], [], []>} : vector<32x384xbf16>, vector<384x128xbf16>, vector<32x128xf32> -> vector<32x128xf32>
    %c1_39 = arith.constant 1 : index
    %c0_40 = arith.constant 0 : index
    %33 = vector.load %arg4[%c1_39, %c0_40] : memref<2x128xf32, #tpu.memory_space<vmem>>, vector<1x128xf32>
    %34 = vector.broadcast %33 : vector<1x128xf32> to vector<32x128xf32>
    %35 = arith.addf %32, %34 : vector<32x128xf32>
    %36 = vector.shape_cast %0 : vector<2x16x128xf32> to vector<32x128xf32>
    %37 = arith.addf %35, %36 : vector<32x128xf32>
    %cst_41 = arith.constant 0.000000e+00 : f32
    %38 = vector.broadcast %cst_41 : f32 to vector<32x128xf32>
    %39 = arith.maximumf %37, %38 : vector<32x128xf32>
    %40 = vector.shape_cast %39 : vector<32x128xf32> to vector<2x16x128xf32>
    %c0_42 = arith.constant 0 : index
    %c0_43 = arith.constant 0 : index
    %c0_44 = arith.constant 0 : index
    %41 = vector.load %arg5[%c0_42, %c0_43, %c0_44] : memref<2x16x128xf32, #tpu.memory_space<vmem>>, vector<2x16x128xf32>
    tpu.vector_store %arg5[%c0_42, %c0_43, %c0_44], %40 {strides = array<i32>} : memref<2x16x128xf32, #tpu.memory_space<vmem>>, vector<2x16x128xf32>,
    return
  }
  func.func @transform_0(%arg0: i32) -> (i32, i32, i32) {
    %c0_i32 = arith.constant 0 : i32
    %c0_i32_0 = arith.constant 0 : i32
    %c0_i32_1 = arith.constant 0 : i32
    %c0_i32_2 = arith.constant 0 : i32
    return %c0_i32, %c0_i32_0, %c0_i32_1 : i32, i32, i32
  }
  func.func @transform_1(%arg0: i32) -> (i32, i32) {
    %c0_i32 = arith.constant 0 : i32
    %c0_i32_0 = arith.constant 0 : i32
    %c0_i32_1 = arith.constant 0 : i32
    return %c0_i32, %c0_i32_0 : i32, i32
  }
  func.func @transform_2(%arg0: i32) -> (i32, i32) {
    %c0_i32 = arith.constant 0 : i32
    %c0_i32_0 = arith.constant 0 : i32
    %c0_i32_1 = arith.constant 0 : i32
    return %c0_i32, %c0_i32_0 : i32, i32
  }
  func.func @transform_3(%arg0: i32) -> (i32, i32) {
    %c0_i32 = arith.constant 0 : i32
    %c0_i32_0 = arith.constant 0 : i32
    %c0_i32_1 = arith.constant 0 : i32
    return %c0_i32, %c0_i32_0 : i32, i32
  }
  func.func @transform_4(%arg0: i32) -> (i32, i32, i32) {
    %c0_i32 = arith.constant 0 : i32
    %c0_i32_0 = arith.constant 0 : i32
    %c0_i32_1 = arith.constant 0 : i32
    %c0_i32_2 = arith.constant 0 : i32
    return %c0_i32, %c0_i32_0, %c0_i32_1 : i32, i32, i32
  }
}

</mosaic_0001>

<llo_original>
// kernel: tpu_custom_call.1
$region0: #{tpu_custom_call.1}
  #allocation0 [shape = 'u32[]', space=smem, size = 0x4, offset = 0x4, fixed_abs, tag = 'smem constant byte address 0x4 - core index']
  #allocation1 [shape = 'u32[144,128]{1,0:T(1,128)}', space=vmem, size = 0x12000, scoped, tag = 'internal scratch']
  #allocation2 [shape = 'f32[2,18,128]{2,1,0:T(8,128)}', space=vmem, size = 0x6000, scoped, tag = 'scratch operand']
  %s0 = inlined_call_operand.hbm [shape: f32[2,16,128], index: 0, kind: input, shape index: {}]
  %s1 = inlined_call_operand.hbm [shape: bf16[384,128], index: 1, kind: input, shape index: {}]
  %s2 = inlined_call_operand.hbm [shape: bf16[384,128], index: 2, kind: input, shape index: {}]
  %s3 = inlined_call_operand.vmem [shape: f32[2,128], index: 3, kind: input, shape index: {}]
  %s4 = inlined_call_operand.hbm [shape: f32[2,16,128], index: 4, kind: output, shape index: {}]
  %s5 = sld [smem:[#allocation0]]
  $region38: #{tpu_custom_call.1} parent=0
    _
  %s7 = ssub.s32 1, %s5
  %s8 = scalar_select 0, %s7, %s5
  $region1: #{tpu_custom_call.1} parent=0
    #allocation3 [shape = 'u8[16384]{0}', space=vmem, size = 0x4000, scoped, tag = 'input window, operand 0, single buffered']
    #allocation4 [shape = 's32[1]{0}', space=sflag, size = 0x4, scoped, tag = 'scoped memory for tpu_custom_call.1']
    #allocation5 [shape = 's32[1]{0}', space=sflag, size = 0x4, scoped, tag = 'scoped memory for tpu_custom_call.1']
    #allocation6 [shape = 'u8[98304]{0}', space=vmem, size = 0x18000, scoped, tag = 'input window, operand 1, single buffered']
    #allocation7 [shape = 's32[1]{0}', space=sflag, size = 0x4, scoped, tag = 'scoped memory for tpu_custom_call.1']
    #allocation8 [shape = 'u8[98304]{0}', space=vmem, size = 0x18000, scoped, tag = 'input window, operand 2, single buffered']
    #allocation9 [shape = 'u8[16384]{0}', space=vmem, size = 0x4000, scoped, tag = 'output window, operand 0, single buffered']
    %9 = vsyncpa [#allocation4], 0
    %10 = vsyncpa [#allocation7], 0
    %11 = vsyncpa [#allocation5], 0
    // Predicated region
    $region2: #{tpu_custom_call.1} parent=1 // pred_check
      _
    $region3: #{tpu_custom_call.1} parent=1 // pred_check_branch
      %13 = sbr.rel (0) target = $region5
    $region4: #{tpu_custom_call.1} parent=1 // pred_region
      %s15 = ssub.s32 512, 512
      %16 = vsyncadd [#allocation4], %s15
      %s17 = sshll.u32 [#allocation3], 4
      %s18 = int_to_ptr.vmem [resolvable:$true] %s17
      %23 = dma.hbm_to_vmem [thread:$0]  %s0, 512, %s18, [#allocation4], 128, 128, 8
    $region5: #{tpu_custom_call.1} parent=1 // pred_fallthru
      _
    // Predicated region
    $region6: #{tpu_custom_call.1} parent=1 // pred_check
      _
    $region7: #{tpu_custom_call.1} parent=1 // pred_check_branch
      %25 = sbr.rel (0) target = $region9
    $region8: #{tpu_custom_call.1} parent=1 // pred_region
      %s27 = ssub.s32 3072, 3072
      %28 = vsyncadd [#allocation7], %s27
      %s29 = sshll.u32 [#allocation6], 4
      %s30 = int_to_ptr.vmem [resolvable:$true] %s29
      %35 = dma.hbm_to_vmem [thread:$0]  %s1, 3072, %s30, [#allocation7], 64, 64, 4
    $region9: #{tpu_custom_call.1} parent=1 // pred_fallthru
      _
    // Predicated region
    $region10: #{tpu_custom_call.1} parent=1 // pred_check
      _
    $region11: #{tpu_custom_call.1} parent=1 // pred_check_branch
      %37 = sbr.rel (0) target = $region13
    $region12: #{tpu_custom_call.1} parent=1 // pred_region
      %s39 = ssub.s32 3072, 3072
      %40 = vsyncadd [#allocation7], %s39
      %s41 = sshll.u32 [#allocation8], 4
      %s42 = int_to_ptr.vmem [resolvable:$true] %s41
      %47 = dma.hbm_to_vmem [thread:$0]  %s2, 3072, %s42, [#allocation7], 64, 64, 4
    $region13: #{tpu_custom_call.1} parent=1 // pred_fallthru
      _
    // Predicated region
    $region14: #{tpu_custom_call.1} parent=1 // pred_check
      _
    $region15: #{tpu_custom_call.1} parent=1 // pred_check_branch
      %49 = sbr.rel (0) target = $region17
    $region16: #{tpu_custom_call.1} parent=1 // pred_region
      _
    $region17: #{tpu_custom_call.1} parent=1 // pred_fallthru
      _
    // Predicated region
    $region18: #{tpu_custom_call.1} parent=1 // pred_check
      _
    $region19: #{tpu_custom_call.1} parent=1 // pred_check_branch
      %51 = sbr.rel (0) target = $region21
    $region20: #{tpu_custom_call.1} parent=1 // pred_region
      %52 = dma.done [#allocation4], 512
    $region21: #{tpu_custom_call.1} parent=1 // pred_fallthru
      _
    // Predicated region
    $region22: #{tpu_custom_call.1} parent=1 // pred_check
      _
    $region23: #{tpu_custom_call.1} parent=1 // pred_check_branch
      %54 = sbr.rel (0) target = $region25
    $region24: #{tpu_custom_call.1} parent=1 // pred_region
      %55 = dma.done [#allocation7], 3072
    $region25: #{tpu_custom_call.1} parent=1 // pred_fallthru
      _
    // Predicated region
    $region26: #{tpu_custom_call.1} parent=1 // pred_check
      _
    $region27: #{tpu_custom_call.1} parent=1 // pred_check_branch
      %57 = sbr.rel (0) target = $region29
    $region28: #{tpu_custom_call.1} parent=1 // pred_region
      %58 = dma.done [#allocation7], 3072
    $region29: #{tpu_custom_call.1} parent=1 // pred_fallthru
      _
    %v60 = vld [vmem:[#allocation3] sm:$0xff]
    %v61 = vld [vmem:[#allocation3 + $0x8] sm:$0xff]
    %v62 = vld [vmem:[#allocation3 + $0x10] sm:$0xff]
    %v63 = vld [vmem:[#allocation3 + $0x18] sm:$0xff]
    %64 = vst [vmem:[#allocation2] sm:$0x1] 0.0
    %65 = vst [vmem:[#allocation2 + $0x18] sm:$0x1] 0.0
    %66 = vst [vmem:[#allocation2 + $0x11] sm:$0x1] 0.0
    %67 = vst [vmem:[#allocation2 + $0x29] sm:$0x1] 0.0
    %68 = vst [vmem:[#allocation2 + $0x1] sm:$0xff] %v60
    %69 = vst [vmem:[#allocation2 + $0x9] sm:$0xff] %v61
    %70 = vst [vmem:[#allocation2 + $0x19] sm:$0xff] %v62
    %71 = vst [vmem:[#allocation2 + $0x21] sm:$0xff] %v63
    %v72 = vld [vmem:[#allocation2] sm:$0xff]
    %v73 = vld [vmem:[#allocation2 + $0x8] sm:$0xff]
    %v74 = vld [vmem:[#allocation2 + $0x18] sm:$0xff]
    %v75 = vld [vmem:[#allocation2 + $0x20] sm:$0xff]
    %v76 = vld [vmem:[#allocation2 + $0x1] sm:$0xff]
    %v77 = vld [vmem:[#allocation2 + $0x9] sm:$0xff]
    %v78 = vld [vmem:[#allocation2 + $0x19] sm:$0xff]
    %v79 = vld [vmem:[#allocation2 + $0x21] sm:$0xff]
    %v80 = vld [vmem:[#allocation2 + $0x2] sm:$0xff]
    %v81 = vld [vmem:[#allocation2 + $0xa] sm:$0xff]
    %v82 = vld [vmem:[#allocation2 + $0x1a] sm:$0xff]
    %v83 = vld [vmem:[#allocation2 + $0x22] sm:$0xff]
    %v84 = vpack.c.bf16 %v73, %v72
    %v85 = vpack.c.bf16 %v77, %v76
    %v86 = vpack.c.bf16 %v81, %v80
    %v87 = vpack.c.bf16 %v75, %v74
    %v88 = vpack.c.bf16 %v79, %v78
    %v89 = vpack.c.bf16 %v83, %v82
    %v90 = vld [vmem:[#allocation6] sm:$0xf]
    %v91 = vld [vmem:[#allocation6 + $0x4] sm:$0xf]
    %v92 = vld [vmem:[#allocation6 + $0x8] sm:$0xf]
    %v93 = vld [vmem:[#allocation6 + $0xc] sm:$0xf]
    %v94 = vld [vmem:[#allocation6 + $0x10] sm:$0xf]
    %v95 = vld [vmem:[#allocation6 + $0x14] sm:$0xf]
    %v96 = vld [vmem:[#allocation6 + $0x18] sm:$0xf]
    %v97 = vld [vmem:[#allocation6 + $0x1c] sm:$0xf]
    %v98 = vld [vmem:[#allocation6 + $0x20] sm:$0xf]
    %v99 = vld [vmem:[#allocation6 + $0x24] sm:$0xf]
    %v100 = vld [vmem:[#allocation6 + $0x28] sm:$0xf]
    %v101 = vld [vmem:[#allocation6 + $0x2c] sm:$0xf]
    %v102 = vld [vmem:[#allocation6 + $0x30] sm:$0xf]
    %v103 = vld [vmem:[#allocation6 + $0x34] sm:$0xf]
    %v104 = vld [vmem:[#allocation6 + $0x38] sm:$0xf]
    %v105 = vld [vmem:[#allocation6 + $0x3c] sm:$0xf]
    %v106 = vld [vmem:[#allocation6 + $0x40] sm:$0xf]
    %v107 = vld [vmem:[#allocation6 + $0x44] sm:$0xf]
    %v108 = vld [vmem:[#allocation6 + $0x48] sm:$0xf]
    %v109 = vld [vmem:[#allocation6 + $0x4c] sm:$0xf]
    %v110 = vld [vmem:[#allocation6 + $0x50] sm:$0xf]
    %v111 = vld [vmem:[#allocation6 + $0x54] sm:$0xf]
    %v112 = vld [vmem:[#allocation6 + $0x58] sm:$0xf]
    %v113 = vld [vmem:[#allocation6 + $0x5c] sm:$0xf]
    %v114 = vld [vmem:[#allocation6 + $0x60] sm:$0xf]
    %v115 = vld [vmem:[#allocation6 + $0x64] sm:$0xf]
    %v116 = vld [vmem:[#allocation6 + $0x68] sm:$0xf]
    %v117 = vld [vmem:[#allocation6 + $0x6c] sm:$0xf]
    %v118 = vld [vmem:[#allocation6 + $0x70] sm:$0xf]
    %v119 = vld [vmem:[#allocation6 + $0x74] sm:$0xf]
    %v120 = vld [vmem:[#allocation6 + $0x78] sm:$0xf]
    %v121 = vld [vmem:[#allocation6 + $0x7c] sm:$0xf]
    %v122 = vld [vmem:[#allocation6 + $0x80] sm:$0xf]
    %v123 = vld [vmem:[#allocation6 + $0x84] sm:$0xf]
    %v124 = vld [vmem:[#allocation6 + $0x88] sm:$0xf]
    %v125 = vld [vmem:[#allocation6 + $0x8c] sm:$0xf]
    %v126 = vld [vmem:[#allocation6 + $0x90] sm:$0xf]
    %v127 = vld [vmem:[#allocation6 + $0x94] sm:$0xf]
    %v128 = vld [vmem:[#allocation6 + $0x98] sm:$0xf]
    %v129 = vld [vmem:[#allocation6 + $0x9c] sm:$0xf]
    %v130 = vld [vmem:[#allocation6 + $0xa0] sm:$0xf]
    %v131 = vld [vmem:[#allocation6 + $0xa4] sm:$0xf]
    %v132 = vld [vmem:[#allocation6 + $0xa8] sm:$0xf]
    %v133 = vld [vmem:[#allocation6 + $0xac] sm:$0xf]
    %v134 = vld [vmem:[#allocation6 + $0xb0] sm:$0xf]
    %v135 = vld [vmem:[#allocation6 + $0xb4] sm:$0xf]
    %v136 = vld [vmem:[#allocation6 + $0xb8] sm:$0xf]
    %v137 = vld [vmem:[#allocation6 + $0xbc] sm:$0xf]
    %v138 = vld [vmem:[%s3] sm:$0x1]
    %v139 = vlaneseq
    %v140 = vshrl.u32 %v139, 7
    %v141 = vsub.s32 0, %v140
    %v142 = vrot.slane %v138, %v141
    %v191 = vunpack.c.l.b16 %v90
    %v192 = vunpack.c.l.b16 %v91
    %v193 = vunpack.c.l.b16 %v92
    %v194 = vunpack.c.l.b16 %v93
    %v195 = vunpack.c.l.b16 %v94
    %v196 = vunpack.c.l.b16 %v95
    %v197 = vunpack.c.l.b16 %v96
    %v198 = vunpack.c.l.b16 %v97
    %v199 = vunpack.c.l.b16 %v98
    %v200 = vunpack.c.l.b16 %v99
    %v201 = vunpack.c.l.b16 %v100
    %v202 = vunpack.c.l.b16 %v101
    %v203 = vunpack.c.l.b16 %v102
    %v204 = vunpack.c.l.b16 %v103
    %v205 = vunpack.c.l.b16 %v104
    %v206 = vunpack.c.l.b16 %v105
    %v207 = vunpack.c.l.b16 %v106
    %v208 = vunpack.c.l.b16 %v107
    %v209 = vunpack.c.l.b16 %v108
    %v210 = vunpack.c.l.b16 %v109
    %v211 = vunpack.c.l.b16 %v110
    %v212 = vunpack.c.l.b16 %v111
    %v213 = vunpack.c.l.b16 %v112
    %v214 = vunpack.c.l.b16 %v113
    %v215 = vunpack.c.l.b16 %v114
    %v216 = vunpack.c.l.b16 %v115
    %v217 = vunpack.c.l.b16 %v116
    %v218 = vunpack.c.l.b16 %v117
    %v219 = vunpack.c.l.b16 %v118
    %v220 = vunpack.c.l.b16 %v119
    %v221 = vunpack.c.l.b16 %v120
    %v222 = vunpack.c.l.b16 %v121
    %v223 = vunpack.c.l.b16 %v122
    %v224 = vunpack.c.l.b16 %v123
    %v225 = vunpack.c.l.b16 %v124
    %v226 = vunpack.c.l.b16 %v125
    %v227 = vunpack.c.l.b16 %v126
    %v228 = vunpack.c.l.b16 %v127
    %v229 = vunpack.c.l.b16 %v128
    %v230 = vunpack.c.l.b16 %v129
    %v231 = vunpack.c.l.b16 %v130
    %v232 = vunpack.c.l.b16 %v131
    %v233 = vunpack.c.l.b16 %v132
    %v234 = vunpack.c.l.b16 %v133
    %v235 = vunpack.c.l.b16 %v134
    %v236 = vunpack.c.l.b16 %v135
    %v237 = vunpack.c.l.b16 %v136
    %v238 = vunpack.c.l.b16 %v137
    %v239 = vpack.c.b16 %v192, %v191
    %v240 = vpack.c.b16 %v194, %v193
    %v241 = vpack.c.b16 %v196, %v195
    %v242 = vpack.c.b16 %v198, %v197
    %v243 = vpack.c.b16 %v200, %v199
    %v244 = vpack.c.b16 %v202, %v201
    %v245 = vpack.c.b16 %v204, %v203
    %v246 = vpack.c.b16 %v206, %v205
    %v247 = vpack.c.b16 %v208, %v207
    %v248 = vpack.c.b16 %v210, %v209
    %v249 = vpack.c.b16 %v212, %v211
    %v250 = vpack.c.b16 %v214, %v213
    %v251 = vpack.c.b16 %v216, %v215
    %v252 = vpack.c.b16 %v218, %v217
    %v253 = vpack.c.b16 %v220, %v219
    %v254 = vpack.c.b16 %v222, %v221
    %v255 = vpack.c.b16 %v224, %v223
    %v256 = vpack.c.b16 %v226, %v225
    %v257 = vpack.c.b16 %v228, %v227
    %v258 = vpack.c.b16 %v230, %v229
    %v259 = vpack.c.b16 %v232, %v231
    %v260 = vpack.c.b16 %v234, %v233
    %v261 = vpack.c.b16 %v236, %v235
    %v262 = vpack.c.b16 %v238, %v237
    %287 = vmatprep.subr.bf16.mxu0 0
    %288 = vmatpush1.bf16.msra.mxu0 %v239
    %289 = vmatprep.subr.bf16.mxu0 0
    %290 = vmatpush1.bf16.msra.mxu0 %v240
    %291 = vmatprep.subr.bf16.mxu0 0
    %292 = vmatpush1.bf16.msra.mxu0 %v241
    %293 = vmatprep.subr.bf16.mxu0 0
    %294 = vmatpush1.bf16.msra.mxu0 %v242
    %295 = vmatprep.subr.bf16.mxu0 0
    %296 = vmatpush1.bf16.msra.mxu0 %v243
    %297 = vmatprep.subr.bf16.mxu0 0
    %298 = vmatpush1.bf16.msra.mxu0 %v244
    %299 = vmatprep.subr.bf16.mxu0 0
    %300 = vmatpush1.bf16.msra.mxu0 %v245
    %301 = vmatprep.subr.bf16.mxu0 0
    %302 = vmatpush1.bf16.msra.mxu0 %v246
    %303 = vmatprep.subr.bf16.mxu0 0
    %304 = vmatpush1.bf16.msra.mxu0 %v247
    %305 = vmatprep.subr.bf16.mxu0 0
    %306 = vmatpush1.bf16.msra.mxu0 %v248
    %307 = vmatprep.subr.bf16.mxu0 0
    %308 = vmatpush1.bf16.msra.mxu0 %v249
    %309 = vmatprep.subr.bf16.mxu0 0
    %310 = vmatpush1.bf16.msra.mxu0 %v250
    %311 = vmatprep.subr.bf16.mxu0 0
    %312 = vmatpush1.bf16.msra.mxu0 %v251
    %313 = vmatprep.subr.bf16.mxu0 0
    %314 = vmatpush1.bf16.msra.mxu0 %v252
    %315 = vmatprep.subr.bf16.mxu0 0
    %316 = vmatpush1.bf16.msra.mxu0 %v253
    %317 = vmatprep.subr.bf16.mxu0 0
    %318 = vmatpush1.bf16.msra.mxu0 %v254
    %319 = vmatprep.mubr.bf16.mxu0 %v85
    %320 = vmatmul.mubr.bf16.gmra.mrb[0].mxu0 %v84
    %v321 = vpop.f32.mrb[0].mxu0
    %v322 = vadd.f32 %v142, %v321
    %v323 = vpop.f32.mrb[0].mxu0
    %v324 = vpop.f32.mrb[0].mxu0
    %v325 = vadd.f32 %v142, %v324
    %v326 = vpop.f32.mrb[0].mxu0
    %327 = vmatprep.mubr.bf16.mxu0 %v88
    %328 = vmatmul.mubr.bf16.gmra.mrb[0].mxu0 %v87
    %v329 = vpop.f32.mrb[0].mxu0
    %v330 = vadd.f32 %v142, %v329
    %v331 = vpop.f32.mrb[0].mxu0
    %v332 = vpop.f32.mrb[0].mxu0
    %v333 = vadd.f32 %v142, %v332
    %v334 = vpop.f32.mrb[0].mxu0
    %335 = vdwg.mxu0
    %336 = vmatprep.subr.bf16.mxu0 0
    %337 = vmatpush1.bf16.msra.mxu0 %v255
    %338 = vmatprep.subr.bf16.mxu0 0
    %339 = vmatpush1.bf16.msra.mxu0 %v256
    %340 = vmatprep.subr.bf16.mxu0 0
    %341 = vmatpush1.bf16.msra.mxu0 %v257
    %342 = vmatprep.subr.bf16.mxu0 0
    %343 = vmatpush1.bf16.msra.mxu0 %v258
    %344 = vmatprep.subr.bf16.mxu0 0
    %345 = vmatpush1.bf16.msra.mxu0 %v259
    %346 = vmatprep.subr.bf16.mxu0 0
    %347 = vmatpush1.bf16.msra.mxu0 %v260
    %348 = vmatprep.subr.bf16.mxu0 0
    %349 = vmatpush1.bf16.msra.mxu0 %v261
    %350 = vmatprep.subr.bf16.mxu0 0
    %351 = vmatpush1.bf16.msra.mxu0 %v262
    %352 = vmatprep.subr.bf16.mxu0 0
    %353 = vmatpush1.bf16.msra.mxu0 0
    %354 = vmatprep.subr.bf16.mxu0 0
    %355 = vmatpush1.bf16.msra.mxu0 0
    %356 = vmatprep.subr.bf16.mxu0 0
    %357 = vmatpush1.bf16.msra.mxu0 0
    %358 = vmatprep.subr.bf16.mxu0 0
    %359 = vmatpush1.bf16.msra.mxu0 0
    %360 = vmatprep.subr.bf16.mxu0 0
    %361 = vmatpush1.bf16.msra.mxu0 0
    %362 = vmatprep.subr.bf16.mxu0 0
    %363 = vmatpush1.bf16.msra.mxu0 0
    %364 = vmatprep.subr.bf16.mxu0 0
    %365 = vmatpush1.bf16.msra.mxu0 0
    %366 = vmatprep.subr.bf16.mxu0 0
    %367 = vmatpush1.bf16.msra.mxu0 0
    %368 = vmatprep.mubr.bf16.mxu0 0
    %369 = vmatmul.mubr.bf16.gmra.mrb[0].mxu0 %v86
    %v370 = vpop.f32.mrb[0].mxu0
    %v371 = vadd.f32 %v322, %v370
    %v372 = vpop.f32.mrb[0].mxu0
    %v373 = vpop.f32.mrb[0].mxu0
    %v374 = vadd.f32 %v325, %v373
    %v375 = vpop.f32.mrb[0].mxu0
    %376 = vmatprep.mubr.bf16.mxu0 0
    %377 = vmatmul.mubr.bf16.gmra.mrb[0].mxu0 %v89
    %v378 = vpop.f32.mrb[0].mxu0
    %v379 = vadd.f32 %v330, %v378
    %v380 = vpop.f32.mrb[0].mxu0
    %v381 = vpop.f32.mrb[0].mxu0
    %v382 = vadd.f32 %v333, %v381
    %v383 = vpop.f32.mrb[0].mxu0
    %384 = vdwg.mxu0
    %v385 = vmax.f32 %v371, 0.0
    %v386 = vmax.f32 %v374, 0.0
    %v387 = vmax.f32 %v379, 0.0
    %v388 = vmax.f32 %v382, 0.0
    %389 = vst [vmem:[#allocation2 + $0x1] sm:$0xff] %v385
    %390 = vst [vmem:[#allocation2 + $0x9] sm:$0xff] %v386
    %391 = vst [vmem:[#allocation2 + $0x19] sm:$0xff] %v387
    %392 = vst [vmem:[#allocation2 + $0x21] sm:$0xff] %v388
    %v393 = vld [vmem:[#allocation2] sm:$0xff]
    %v394 = vld [vmem:[#allocation2 + $0x8] sm:$0xff]
    %v395 = vld [vmem:[#allocation2 + $0x18] sm:$0xff]
    %v396 = vld [vmem:[#allocation2 + $0x20] sm:$0xff]
    %v397 = vld [vmem:[#allocation2 + $0x1] sm:$0xff]
    %v398 = vld [vmem:[#allocation2 + $0x9] sm:$0xff]
    %v399 = vld [vmem:[#allocation2 + $0x19] sm:$0xff]
    %v400 = vld [vmem:[#allocation2 + $0x21] sm:$0xff]
    %v401 = vld [vmem:[#allocation2 + $0x2] sm:$0xff]
    %v402 = vld [vmem:[#allocation2 + $0xa] sm:$0xff]
    %v403 = vld [vmem:[#allocation2 + $0x1a] sm:$0xff]
    %v404 = vld [vmem:[#allocation2 + $0x22] sm:$0xff]
    %v405 = vpack.c.bf16 %v394, %v393
    %v406 = vpack.c.bf16 %v398, %v397
    %v407 = vpack.c.bf16 %v402, %v401
    %v408 = vpack.c.bf16 %v396, %v395
    %v409 = vpack.c.bf16 %v400, %v399
    %v410 = vpack.c.bf16 %v404, %v403
    %v411 = vld [vmem:[#allocation8] sm:$0xf]
    %v412 = vld [vmem:[#allocation8 + $0x4] sm:$0xf]
    %v413 = vld [vmem:[#allocation8 + $0x8] sm:$0xf]
    %v414 = vld [vmem:[#allocation8 + $0xc] sm:$0xf]
    %v415 = vld [vmem:[#allocation8 + $0x10] sm:$0xf]
    %v416 = vld [vmem:[#allocation8 + $0x14] sm:$0xf]
    %v417 = vld [vmem:[#allocation8 + $0x18] sm:$0xf]
    %v418 = vld [vmem:[#allocation8 + $0x1c] sm:$0xf]
    %v419 = vld [vmem:[#allocation8 + $0x20] sm:$0xf]
    %v420 = vld [vmem:[#allocation8 + $0x24] sm:$0xf]
    %v421 = vld [vmem:[#allocation8 + $0x28] sm:$0xf]
    %v422 = vld [vmem:[#allocation8 + $0x2c] sm:$0xf]
    %v423 = vld [vmem:[#allocation8 + $0x30] sm:$0xf]
    %v424 = vld [vmem:[#allocation8 + $0x34] sm:$0xf]
    %v425 = vld [vmem:[#allocation8 + $0x38] sm:$0xf]
    %v426 = vld [vmem:[#allocation8 + $0x3c] sm:$0xf]
    %v427 = vld [vmem:[#allocation8 + $0x40] sm:$0xf]
    %v428 = vld [vmem:[#allocation8 + $0x44] sm:$0xf]
    %v429 = vld [vmem:[#allocation8 + $0x48] sm:$0xf]
    %v430 = vld [vmem:[#allocation8 + $0x4c] sm:$0xf]
    %v431 = vld [vmem:[#allocation8 + $0x50] sm:$0xf]
    %v432 = vld [vmem:[#allocation8 + $0x54] sm:$0xf]
    %v433 = vld [vmem:[#allocation8 + $0x58] sm:$0xf]
    %v434 = vld [vmem:[#allocation8 + $0x5c] sm:$0xf]
    %v435 = vld [vmem:[#allocation8 + $0x60] sm:$0xf]
    %v436 = vld [vmem:[#allocation8 + $0x64] sm:$0xf]
    %v437 = vld [vmem:[#allocation8 + $0x68] sm:$0xf]
    %v438 = vld [vmem:[#allocation8 + $0x6c] sm:$0xf]
    %v439 = vld [vmem:[#allocation8 + $0x70] sm:$0xf]
    %v440 = vld [vmem:[#allocation8 + $0x74] sm:$0xf]
    %v441 = vld [vmem:[#allocation8 + $0x78] sm:$0xf]
    %v442 = vld [vmem:[#allocation8 + $0x7c] sm:$0xf]
    %v443 = vld [vmem:[#allocation8 + $0x80] sm:$0xf]
    %v444 = vld [vmem:[#allocation8 + $0x84] sm:$0xf]
    %v445 = vld [vmem:[#allocation8 + $0x88] sm:$0xf]
    %v446 = vld [vmem:[#allocation8 + $0x8c] sm:$0xf]
    %v447 = vld [vmem:[#allocation8 + $0x90] sm:$0xf]
    %v448 = vld [vmem:[#allocation8 + $0x94] sm:$0xf]
    %v449 = vld [vmem:[#allocation8 + $0x98] sm:$0xf]
    %v450 = vld [vmem:[#allocation8 + $0x9c] sm:$0xf]
    %v451 = vld [vmem:[#allocation8 + $0xa0] sm:$0xf]
    %v452 = vld [vmem:[#allocation8 + $0xa4] sm:$0xf]
    %v453 = vld [vmem:[#allocation8 + $0xa8] sm:$0xf]
    %v454 = vld [vmem:[#allocation8 + $0xac] sm:$0xf]
    %v455 = vld [vmem:[#allocation8 + $0xb0] sm:$0xf]
    %v456 = vld [vmem:[#allocation8 + $0xb4] sm:$0xf]
    %v457 = vld [vmem:[#allocation8 + $0xb8] sm:$0xf]
    %v458 = vld [vmem:[#allocation8 + $0xbc] sm:$0xf]
    %v459 = vld [vmem:[%s3 + $0x1] sm:$0x1]
    %v460 = vlaneseq
    %v461 = vshrl.u32 %v460, 7
    %v462 = vsub.s32 0, %v461
    %v463 = vrot.slane %v459, %v462
    %v512 = vunpack.c.l.b16 %v411
    %v513 = vunpack.c.l.b16 %v412
    %v514 = vunpack.c.l.b16 %v413
    %v515 = vunpack.c.l.b16 %v414
    %v516 = vunpack.c.l.b16 %v415
    %v517 = vunpack.c.l.b16 %v416
    %v518 = vunpack.c.l.b16 %v417
    %v519 = vunpack.c.l.b16 %v418
    %v520 = vunpack.c.l.b16 %v419
    %v521 = vunpack.c.l.b16 %v420
    %v522 = vunpack.c.l.b16 %v421
    %v523 = vunpack.c.l.b16 %v422
    %v524 = vunpack.c.l.b16 %v423
    %v525 = vunpack.c.l.b16 %v424
    %v526 = vunpack.c.l.b16 %v425
    %v527 = vunpack.c.l.b16 %v426
    %v528 = vunpack.c.l.b16 %v427
    %v529 = vunpack.c.l.b16 %v428
    %v530 = vunpack.c.l.b16 %v429
    %v531 = vunpack.c.l.b16 %v430
    %v532 = vunpack.c.l.b16 %v431
    %v533 = vunpack.c.l.b16 %v432
    %v534 = vunpack.c.l.b16 %v433
    %v535 = vunpack.c.l.b16 %v434
    %v536 = vunpack.c.l.b16 %v435
    %v537 = vunpack.c.l.b16 %v436
    %v538 = vunpack.c.l.b16 %v437
    %v539 = vunpack.c.l.b16 %v438
    %v540 = vunpack.c.l.b16 %v439
    %v541 = vunpack.c.l.b16 %v440
    %v542 = vunpack.c.l.b16 %v441
    %v543 = vunpack.c.l.b16 %v442
    %v544 = vunpack.c.l.b16 %v443
    %v545 = vunpack.c.l.b16 %v444
    %v546 = vunpack.c.l.b16 %v445
    %v547 = vunpack.c.l.b16 %v446
    %v548 = vunpack.c.l.b16 %v447
    %v549 = vunpack.c.l.b16 %v448
    %v550 = vunpack.c.l.b16 %v449
    %v551 = vunpack.c.l.b16 %v450
    %v552 = vunpack.c.l.b16 %v451
    %v553 = vunpack.c.l.b16 %v452
    %v554 = vunpack.c.l.b16 %v453
    %v555 = vunpack.c.l.b16 %v454
    %v556 = vunpack.c.l.b16 %v455
    %v557 = vunpack.c.l.b16 %v456
    %v558 = vunpack.c.l.b16 %v457
    %v559 = vunpack.c.l.b16 %v458
    %v560 = vpack.c.b16 %v513, %v512
    %v561 = vpack.c.b16 %v515, %v514
    %v562 = vpack.c.b16 %v517, %v516
    %v563 = vpack.c.b16 %v519, %v518
    %v564 = vpack.c.b16 %v521, %v520
    %v565 = vpack.c.b16 %v523, %v522
    %v566 = vpack.c.b16 %v525, %v524
    %v567 = vpack.c.b16 %v527, %v526
    %v568 = vpack.c.b16 %v529, %v528
    %v569 = vpack.c.b16 %v531, %v530
    %v570 = vpack.c.b16 %v533, %v532
    %v571 = vpack.c.b16 %v535, %v534
    %v572 = vpack.c.b16 %v537, %v536
    %v573 = vpack.c.b16 %v539, %v538
    %v574 = vpack.c.b16 %v541, %v540
    %v575 = vpack.c.b16 %v543, %v542
    %v576 = vpack.c.b16 %v545, %v544
    %v577 = vpack.c.b16 %v547, %v546
    %v578 = vpack.c.b16 %v549, %v548
    %v579 = vpack.c.b16 %v551, %v550
    %v580 = vpack.c.b16 %v553, %v552
    %v581 = vpack.c.b16 %v555, %v554
    %v582 = vpack.c.b16 %v557, %v556
    %v583 = vpack.c.b16 %v559, %v558
    %608 = vmatprep.subr.bf16.mxu0 0
    %609 = vmatpush1.bf16.msra.mxu0 %v560
    %610 = vmatprep.subr.bf16.mxu0 0
    %611 = vmatpush1.bf16.msra.mxu0 %v561
    %612 = vmatprep.subr.bf16.mxu0 0
    %613 = vmatpush1.bf16.msra.mxu0 %v562
    %614 = vmatprep.subr.bf16.mxu0 0
    %615 = vmatpush1.bf16.msra.mxu0 %v563
    %616 = vmatprep.subr.bf16.mxu0 0
    %617 = vmatpush1.bf16.msra.mxu0 %v564
    %618 = vmatprep.subr.bf16.mxu0 0
    %619 = vmatpush1.bf16.msra.mxu0 %v565
    %620 = vmatprep.subr.bf16.mxu0 0
    %621 = vmatpush1.bf16.msra.mxu0 %v566
    %622 = vmatprep.subr.bf16.mxu0 0
    %623 = vmatpush1.bf16.msra.mxu0 %v567
    %624 = vmatprep.subr.bf16.mxu0 0
    %625 = vmatpush1.bf16.msra.mxu0 %v568
    %626 = vmatprep.subr.bf16.mxu0 0
    %627 = vmatpush1.bf16.msra.mxu0 %v569
    %628 = vmatprep.subr.bf16.mxu0 0
    %629 = vmatpush1.bf16.msra.mxu0 %v570
    %630 = vmatprep.subr.bf16.mxu0 0
    %631 = vmatpush1.bf16.msra.mxu0 %v571
    %632 = vmatprep.subr.bf16.mxu0 0
    %633 = vmatpush1.bf16.msra.mxu0 %v572
    %634 = vmatprep.subr.bf16.mxu0 0
    %635 = vmatpush1.bf16.msra.mxu0 %v573
    %636 = vmatprep.subr.bf16.mxu0 0
    %637 = vmatpush1.bf16.msra.mxu0 %v574
    %638 = vmatprep.subr.bf16.mxu0 0
    %639 = vmatpush1.bf16.msra.mxu0 %v575
    %640 = vmatprep.mubr.bf16.mxu0 %v406
    %641 = vmatmul.mubr.bf16.gmra.mrb[0].mxu0 %v405
    %v642 = vpop.f32.mrb[0].mxu0
    %v643 = vadd.f32 %v463, %v642
    %v644 = vpop.f32.mrb[0].mxu0
    %v645 = vpop.f32.mrb[0].mxu0
    %v646 = vadd.f32 %v463, %v645
    %v647 = vpop.f32.mrb[0].mxu0
    %648 = vmatprep.mubr.bf16.mxu0 %v409
    %649 = vmatmul.mubr.bf16.gmra.mrb[0].mxu0 %v408
    %v650 = vpop.f32.mrb[0].mxu0
    %v651 = vadd.f32 %v463, %v650
    %v652 = vpop.f32.mrb[0].mxu0
    %v653 = vpop.f32.mrb[0].mxu0
    %v654 = vadd.f32 %v463, %v653
    %v655 = vpop.f32.mrb[0].mxu0
    %656 = vdwg.mxu0
    %657 = vmatprep.subr.bf16.mxu0 0
    %658 = vmatpush1.bf16.msra.mxu0 %v576
    %659 = vmatprep.subr.bf16.mxu0 0
    %660 = vmatpush1.bf16.msra.mxu0 %v577
    %661 = vmatprep.subr.bf16.mxu0 0
    %662 = vmatpush1.bf16.msra.mxu0 %v578
    %663 = vmatprep.subr.bf16.mxu0 0
    %664 = vmatpush1.bf16.msra.mxu0 %v579
    %665 = vmatprep.subr.bf16.mxu0 0
    %666 = vmatpush1.bf16.msra.mxu0 %v580
    %667 = vmatprep.subr.bf16.mxu0 0
    %668 = vmatpush1.bf16.msra.mxu0 %v581
    %669 = vmatprep.subr.bf16.mxu0 0
    %670 = vmatpush1.bf16.msra.mxu0 %v582
    %671 = vmatprep.subr.bf16.mxu0 0
    %672 = vmatpush1.bf16.msra.mxu0 %v583
    %673 = vmatprep.subr.bf16.mxu0 0
    %674 = vmatpush1.bf16.msra.mxu0 0
    %675 = vmatprep.subr.bf16.mxu0 0
    %676 = vmatpush1.bf16.msra.mxu0 0
    %677 = vmatprep.subr.bf16.mxu0 0
    %678 = vmatpush1.bf16.msra.mxu0 0
    %679 = vmatprep.subr.bf16.mxu0 0
    %680 = vmatpush1.bf16.msra.mxu0 0
    %681 = vmatprep.subr.bf16.mxu0 0
    %682 = vmatpush1.bf16.msra.mxu0 0
    %683 = vmatprep.subr.bf16.mxu0 0
    %684 = vmatpush1.bf16.msra.mxu0 0
    %685 = vmatprep.subr.bf16.mxu0 0
    %686 = vmatpush1.bf16.msra.mxu0 0
    %687 = vmatprep.subr.bf16.mxu0 0
    %688 = vmatpush1.bf16.msra.mxu0 0
    %689 = vmatprep.mubr.bf16.mxu0 0
    %690 = vmatmul.mubr.bf16.gmra.mrb[0].mxu0 %v407
    %v691 = vpop.f32.mrb[0].mxu0
    %v692 = vadd.f32 %v643, %v691
    %v693 = vpop.f32.mrb[0].mxu0
    %v694 = vpop.f32.mrb[0].mxu0
    %v695 = vadd.f32 %v646, %v694
    %v696 = vpop.f32.mrb[0].mxu0
    %697 = vmatprep.mubr.bf16.mxu0 0
    %698 = vmatmul.mubr.bf16.gmra.mrb[0].mxu0 %v410
    %v699 = vpop.f32.mrb[0].mxu0
    %v700 = vadd.f32 %v651, %v699
    %v701 = vpop.f32.mrb[0].mxu0
    %v702 = vpop.f32.mrb[0].mxu0
    %v703 = vadd.f32 %v654, %v702
    %v704 = vpop.f32.mrb[0].mxu0
    %705 = vdwg.mxu0
    %v706 = vadd.f32 %v692, %v60
    %v707 = vadd.f32 %v695, %v61
    %v708 = vadd.f32 %v700, %v62
    %v709 = vadd.f32 %v703, %v63
    %v710 = vmax.f32 %v706, 0.0
    %v711 = vmax.f32 %v707, 0.0
    %v712 = vmax.f32 %v708, 0.0
    %v713 = vmax.f32 %v709, 0.0
    %714 = vst [vmem:[#allocation9] sm:$0xff] %v710
    %715 = vst [vmem:[#allocation9 + $0x8] sm:$0xff] %v711
    %716 = vst [vmem:[#allocation9 + $0x10] sm:$0xff] %v712
    %717 = vst [vmem:[#allocation9 + $0x18] sm:$0xff] %v713
    // Predicated region
    $region30: #{tpu_custom_call.1} parent=1 // pred_check
      _
    $region31: #{tpu_custom_call.1} parent=1 // pred_check_branch
      %719 = sbr.rel (0) target = $region33
    $region32: #{tpu_custom_call.1} parent=1 // pred_region
      %s721 = ssub.s32 512, 512
      %722 = vsyncadd [#allocation5], %s721
      %s723 = sshll.u32 [#allocation9], 4
      %s724 = int_to_ptr.vmem [resolvable:$true] %s723
      %729 = dma.vmem_to_hbm [thread:$0]  %s724, 512, %s4, [#allocation5], 128, 128, 8
    $region33: #{tpu_custom_call.1} parent=1 // pred_fallthru
      _
    // Predicated region
    $region34: #{tpu_custom_call.1} parent=1 // pred_check
      _
    $region35: #{tpu_custom_call.1} parent=1 // pred_check_branch
      %731 = sbr.rel (0) target = $region37
    $region36: #{tpu_custom_call.1} parent=1 // pred_region
      %732 = dma.done [#allocation5], 512
    $region37: #{tpu_custom_call.1} parent=1 // pred_fallthru
      _
    %733 = vsyncpa [#allocation4], 1
    %734 = vsyncpa [#allocation7], 1
    %735 = vsyncpa [#allocation5], 1

</llo_original>
